<compile_context>
chip_gen: v7x
topology: tpu7x:2x2x1
jax: 0.10.0
libtpu: 0.0.40
codegen_flags: <defaults>
</compile_context>

<pallas_src>
import functools

import jax
import jax.numpy as jnp
from jax.experimental import pallas as pl
from jax.experimental.pallas import tpu as pltpu


def _relu6(x):
    return jnp.clip(x, 0.0, 6.0)


# ------------------------------ fused kernel ------------------------------- #

def _block_kernel(x_ref, m_ref, w1_ref, b1_ref, w2_ref, b2_ref, o_ref, *, W, HW):
    """Fused MyQBasicBlock forward for one image (stride=1, downsample=None).

    x_ref  : (1, C, HW)      input image, channel-major, HW on lanes
    m_ref  : (9*C, HW)       per-tap spatial validity mask (== zero padding)
    w*_ref : (C, 9*C)        conv weights with BN scale folded, tap-major rows
    b*_ref : (C, 1)          folded BatchNorm bias
    o_ref  : (1, C, HW)      output image
    """
    x = x_ref[0].astype(jnp.float32)            # (C, HW)
    mfull = m_ref[...]                          # (9C, HW)

    def conv3x3_bn(a, w_ref, b_ref):
        # im2col on lanes: 9 rolled copies of the activation; the mask zeroes the
        # positions that correspond to the conv's zero padding (exact, regardless
        # of the pre-activation's value at 0).
        pieces = []
        for dh in (-1, 0, 1):
            for dw in (-1, 0, 1):
                delta = dh * W + dw             # flat spatial offset of this tap
                if delta == 0:
                    pieces.append(a)
                else:
                    pieces.append(pltpu.roll(a, shift=(-delta) % HW, axis=1))
        patches = jnp.concatenate(pieces, axis=0) * mfull      # (9C, HW)
        # Single GEMM per conv: (Cout, 9C) x (9C, HW) -> (Cout, HW); bias seed add.
        return jnp.dot(w_ref[...], patches,
                       preferred_element_type=jnp.float32) + b_ref[...]

    h1 = conv3x3_bn(_relu6(x), w1_ref, b1_ref)      # (C, HW)
    h2 = conv3x3_bn(_relu6(h1), w2_ref, b2_ref)     # (C, HW)
    out = _relu6(h2 + x)                            # residual + final ReLU6
    o_ref[...] = out[None].astype(o_ref.dtype)


# ------------------------------- the block --------------------------------- #

def my_qbasic_block(x_nchw, params, *, stride=1):
    """Forward of MyQBasicBlock (stride=1, downsample=None, quant_mode='void')."""
    assert stride == 1, "this config uses stride=1 (downsample=None)"
    N, C, H, W = x_nchw.shape
    HW = H * W
    x = x_nchw.reshape(N, C, HW)                    # pure reshape, no transpose

    # Fold BN scale into weights and reshape to (Cout, 9*Cin), tap-major rows
    # matching the kernel's (dh, dw) loop order (t = (dh+1)*3 + (dw+1)).
    def prep_w(w, scale):
        cin, cout = w.shape[2], w.shape[3]
        wf = w * scale[None, None, None, :]                         # (3,3,Cin,Cout)
        return jnp.transpose(wf, (3, 0, 1, 2)).reshape(cout, 9 * cin)

    wm1 = prep_w(params["w1"], params["scale1"])
    wm2 = prep_w(params["w2"], params["scale2"])
    b1 = params["bias1"].reshape(C, 1)
    b2 = params["bias2"].reshape(C, 1)

    # Per-tap spatial validity masks (implement the 1-pixel zero padding),
    # repeated per input channel so the kernel applies them in one multiply.
    hh = jnp.arange(HW, dtype=jnp.int32) // W
    ww = jnp.arange(HW, dtype=jnp.int32) % W
    mask_rows = []
    for dh in (-1, 0, 1):
        for dw in (-1, 0, 1):
            valid = ((hh + dh >= 0) & (hh + dh < H) &
                     (ww + dw >= 0) & (ww + dw < W))
            mask_rows.append(valid.astype(jnp.float32))
    masks = jnp.repeat(jnp.stack(mask_rows, axis=0), C, axis=0)     # (9C, HW)

    kernel = functools.partial(_block_kernel, W=W, HW=HW)
    out = pl.pallas_call(
        kernel,
        out_shape=jax.ShapeDtypeStruct((N, C, HW), x.dtype),
        grid_spec=pltpu.PrefetchScalarGridSpec(
            num_scalar_prefetch=0,
            grid=(N,),
            in_specs=[
                pl.BlockSpec((1, C, HW), lambda n: (n, 0, 0)),
                pl.BlockSpec((9 * C, HW), lambda n: (0, 0)),
                pl.BlockSpec((C, 9 * C), lambda n: (0, 0)),
                pl.BlockSpec((C, 1), lambda n: (0, 0)),
                pl.BlockSpec((C, 9 * C), lambda n: (0, 0)),
                pl.BlockSpec((C, 1), lambda n: (0, 0)),
            ],
            out_specs=pl.BlockSpec((1, C, HW), lambda n: (n, 0, 0)),
        ),
        compiler_params=pltpu.CompilerParams(
            dimension_semantics=("parallel",),
            # Conservative, safe on v5e/v6e/v7x; production sizes should tile
            # spatially rather than growing this.
            vmem_limit_bytes=32 * 1024 * 1024,
        ),
    )(x, masks, wm1, b1, wm2, b2)

    return out.reshape(N, C, H, W)                  # pure reshape back to NCHW


# ----------------------------- reference (JAX) ------------------------------ #

def _ref_block(x_nchw, params, stride=1):
    def fconv(x, w, scale, bias, s):
        h = _relu6(x)
        y = jax.lax.conv_general_dilated(
            h, w, (s, s), ((1, 1), (1, 1)),
            dimension_numbers=("NCHW", "HWIO", "NCHW"))
        return y * scale[None, :, None, None] + bias[None, :, None, None]
    o = fconv(x_nchw, params["w1"], params["scale1"], params["bias1"], stride)
    o = fconv(o, params["w2"], params["scale2"], params["bias2"], 1)
    return _relu6(o + x_nchw)


# --------------------------------- main ------------------------------------ #

def _init_params(key, inplanes, planes):
    ks = jax.random.split(key, 8)
    eps = 1e-5

    def fold_bn(gamma, beta, mean, var):
        scale = gamma / jnp.sqrt(var + eps)
        bias = beta - mean * scale
        return scale, bias

    w1 = jax.random.normal(ks[0], (3, 3, inplanes, planes), jnp.float32) * 0.2
    g1 = 1.0 + 0.1 * jax.random.normal(ks[1], (planes,), jnp.float32)
    b1 = 0.05 * jax.random.normal(ks[2], (planes,), jnp.float32)
    m1 = 0.1 * jax.random.normal(ks[3], (planes,), jnp.float32)
    v1 = 1.0 + 0.1 * jax.random.uniform(ks[3], (planes,), jnp.float32)
    s1, o1 = fold_bn(g1, b1, m1, v1)

    w2 = jax.random.normal(ks[4], (3, 3, planes, planes), jnp.float32) * 0.2
    g2 = 1.0 + 0.1 * jax.random.normal(ks[5], (planes,), jnp.float32)
    b2 = 0.05 * jax.random.normal(ks[6], (planes,), jnp.float32)
    m2 = 0.1 * jax.random.normal(ks[7], (planes,), jnp.float32)
    v2 = 1.0 + 0.1 * jax.random.uniform(ks[7], (planes,), jnp.float32)
    s2, o2 = fold_bn(g2, b2, m2, v2)

    return {"w1": w1, "scale1": s1, "bias1": o1,
            "w2": w2, "scale2": s2, "bias2": o2}


if __name__ == "__main__":
    key = jax.random.PRNGKey(0)
    k_x, k_p = jax.random.split(key)

    N, C, H, W = 2, 4, 16, 16        # inplanes = planes = 4, stride = 1
    x = jax.random.normal(k_x, (N, C, H, W), jnp.float32)
    params = _init_params(k_p, C, C)

    out = jax.block_until_ready(my_qbasic_block(x, params, stride=1))
    ref = jax.block_until_ready(_ref_block(x, params, stride=1))

    assert out.shape == (N, C, H, W)
    assert jnp.allclose(out, ref, atol=1e-3, rtol=1e-3), \
        f"max err {jnp.max(jnp.abs(out - ref))}"
    print("KERNEL_OK")
</pallas_src>

<mosaic_0001>
module attributes {stable_mosaic.version = 11 : i64} {
  func.func @_block_kernel(%arg0: i32, %arg1: memref<1x4x256xf32, #tpu.memory_space<vmem>>, %arg2: memref<36x256xf32, #tpu.memory_space<vmem>>, %arg3: memref<4x36xf32, #tpu.memory_space<vmem>>, %arg4: memref<4x1xf32, #tpu.memory_space<vmem>>, %arg5: memref<4x36xf32, #tpu.memory_space<vmem>>, %arg6: memref<4x1xf32, #tpu.memory_space<vmem>>, %arg7: memref<1x4x256xf32, #tpu.memory_space<vmem>>) attributes {dimension_semantics = [#tpu.dimension_semantics<parallel>], iteration_bounds = array<i64: 2>, scalar_prefetch = 0 : i64, scratch_operands = 0 : i64, tpu.core_type = #tpu.core_type<tc>, window_params = [{transform_indices = @transform_0, window_bounds = array<i64: 1, 4, 256>}, {pipeline_mode = #tpu.pipeline_mode<synchronous>, transform_indices = @transform_1, window_bounds = array<i64: 36, 256>}, {pipeline_mode = #tpu.pipeline_mode<synchronous>, transform_indices = @transform_2, window_bounds = array<i64: 4, 36>}, {pipeline_mode = #tpu.pipeline_mode<synchronous>, transform_indices = @transform_3, window_bounds = array<i64: 4, 1>}, {pipeline_mode = #tpu.pipeline_mode<synchronous>, transform_indices = @transform_4, window_bounds = array<i64: 4, 36>}, {pipeline_mode = #tpu.pipeline_mode<synchronous>, transform_indices = @transform_5, window_bounds = array<i64: 4, 1>}, {transform_indices = @transform_6, window_bounds = array<i64: 1, 4, 256>}]} {
    %c0 = arith.constant 0 : index
    %c0_0 = arith.constant 0 : index
    %c0_1 = arith.constant 0 : index
    %0 = vector.load %arg1[%c0, %c0_0, %c0_1] : memref<1x4x256xf32, #tpu.memory_space<vmem>>, vector<1x4x256xf32>
    %1 = vector.shape_cast %0 : vector<1x4x256xf32> to vector<4x256xf32>
    %c0_2 = arith.constant 0 : index
    %c0_3 = arith.constant 0 : index
    %2 = vector.load %arg2[%c0_2, %c0_3] : memref<36x256xf32, #tpu.memory_space<vmem>>, vector<36x256xf32>
    %cst = arith.constant 0.000000e+00 : f32
    %cst_4 = arith.constant 6.000000e+00 : f32
    %3 = vector.broadcast %cst : f32 to vector<4x256xf32>
    %4 = arith.maximumf %3, %1 : vector<4x256xf32>
    %5 = vector.broadcast %cst_4 : f32 to vector<4x256xf32>
    %6 = arith.minimumf %5, %4 : vector<4x256xf32>
    %c17_i32 = arith.constant 17 : i32
    %7 = tpu.dynamic_rotate %6 by %c17_i32 dim 1 : vector<4x256xf32>, i32 -> vector<4x256xf32>
    %c16_i32 = arith.constant 16 : i32
    %8 = tpu.dynamic_rotate %6 by %c16_i32 dim 1 : vector<4x256xf32>, i32 -> vector<4x256xf32>
    %c15_i32 = arith.constant 15 : i32
    %9 = tpu.dynamic_rotate %6 by %c15_i32 dim 1 : vector<4x256xf32>, i32 -> vector<4x256xf32>
    %c1_i32 = arith.constant 1 : i32
    %10 = tpu.dynamic_rotate %6 by %c1_i32 dim 1 : vector<4x256xf32>, i32 -> vector<4x256xf32>
    %c255_i32 = arith.constant 255 : i32
    %11 = tpu.dynamic_rotate %6 by %c255_i32 dim 1 : vector<4x256xf32>, i32 -> vector<4x256xf32>
    %c241_i32 = arith.constant 241 : i32
    %12 = tpu.dynamic_rotate %6 by %c241_i32 dim 1 : vector<4x256xf32>, i32 -> vector<4x256xf32>
    %c240_i32 = arith.constant 240 : i32
    %13 = tpu.dynamic_rotate %6 by %c240_i32 dim 1 : vector<4x256xf32>, i32 -> vector<4x256xf32>
    %c239_i32 = arith.constant 239 : i32
    %14 = tpu.dynamic_rotate %6 by %c239_i32 dim 1 : vector<4x256xf32>, i32 -> vector<4x256xf32>
    %15 = tpu.concatenate %7, %8, %9, %10, %6, %11, %12, %13, %14 in 0 : vector<4x256xf32>, vector<4x256xf32>, vector<4x256xf32>, vector<4x256xf32>, vector<4x256xf32>, vector<4x256xf32>, vector<4x256xf32>, vector<4x256xf32>, vector<4x256xf32> -> vector<36x256xf32>
    %16 = arith.mulf %15, %2 : vector<36x256xf32>
    %c0_5 = arith.constant 0 : index
    %c0_6 = arith.constant 0 : index
    %17 = vector.load %arg3[%c0_5, %c0_6] : memref<4x36xf32, #tpu.memory_space<vmem>>, vector<4x36xf32>
    %cst_7 = arith.constant dense<0.000000e+00> : vector<4x256xf32>
    %18 = tpu.matmul %17, %16, %cst_7 {dimension_numbers = #tpu.dot_dimension_numbers<[1], [0], [0], [1], [0, 0, 1, 1], [], []>} : vector<4x36xf32>, vector<36x256xf32>, vector<4x256xf32> -> vector<4x256xf32>
    %c0_8 = arith.constant 0 : index
    %c0_9 = arith.constant 0 : index
    %19 = vector.load %arg4[%c0_8, %c0_9] : memref<4x1xf32, #tpu.memory_space<vmem>>, vector<4x1xf32>
    %20 = vector.broadcast %19 : vector<4x1xf32> to vector<4x256xf32>
    %21 = arith.addf %18, %20 : vector<4x256xf32>
    %cst_10 = arith.constant 0.000000e+00 : f32
    %cst_11 = arith.constant 6.000000e+00 : f32
    %22 = vector.broadcast %cst_10 : f32 to vector<4x256xf32>
    %23 = arith.maximumf %22, %21 : vector<4x256xf32>
    %24 = vector.broadcast %cst_11 : f32 to vector<4x256xf32>
    %25 = arith.minimumf %24, %23 : vector<4x256xf32>
    %c17_i32_12 = arith.constant 17 : i32
    %26 = tpu.dynamic_rotate %25 by %c17_i32_12 dim 1 : vector<4x256xf32>, i32 -> vector<4x256xf32>
    %c16_i32_13 = arith.constant 16 : i32
    %27 = tpu.dynamic_rotate %25 by %c16_i32_13 dim 1 : vector<4x256xf32>, i32 -> vector<4x256xf32>
    %c15_i32_14 = arith.constant 15 : i32
    %28 = tpu.dynamic_rotate %25 by %c15_i32_14 dim 1 : vector<4x256xf32>, i32 -> vector<4x256xf32>
    %c1_i32_15 = arith.constant 1 : i32
    %29 = tpu.dynamic_rotate %25 by %c1_i32_15 dim 1 : vector<4x256xf32>, i32 -> vector<4x256xf32>
    %c255_i32_16 = arith.constant 255 : i32
    %30 = tpu.dynamic_rotate %25 by %c255_i32_16 dim 1 : vector<4x256xf32>, i32 -> vector<4x256xf32>
    %c241_i32_17 = arith.constant 241 : i32
    %31 = tpu.dynamic_rotate %25 by %c241_i32_17 dim 1 : vector<4x256xf32>, i32 -> vector<4x256xf32>
    %c240_i32_18 = arith.constant 240 : i32
    %32 = tpu.dynamic_rotate %25 by %c240_i32_18 dim 1 : vector<4x256xf32>, i32 -> vector<4x256xf32>
    %c239_i32_19 = arith.constant 239 : i32
    %33 = tpu.dynamic_rotate %25 by %c239_i32_19 dim 1 : vector<4x256xf32>, i32 -> vector<4x256xf32>
    %34 = tpu.concatenate %26, %27, %28, %29, %25, %30, %31, %32, %33 in 0 : vector<4x256xf32>, vector<4x256xf32>, vector<4x256xf32>, vector<4x256xf32>, vector<4x256xf32>, vector<4x256xf32>, vector<4x256xf32>, vector<4x256xf32>, vector<4x256xf32> -> vector<36x256xf32>
    %35 = arith.mulf %34, %2 : vector<36x256xf32>
    %c0_20 = arith.constant 0 : index
    %c0_21 = arith.constant 0 : index
    %36 = vector.load %arg5[%c0_20, %c0_21] : memref<4x36xf32, #tpu.memory_space<vmem>>, vector<4x36xf32>
    %cst_22 = arith.constant dense<0.000000e+00> : vector<4x256xf32>
    %37 = tpu.matmul %36, %35, %cst_22 {dimension_numbers = #tpu.dot_dimension_numbers<[1], [0], [0], [1], [0, 0, 1, 1], [], []>} : vector<4x36xf32>, vector<36x256xf32>, vector<4x256xf32> -> vector<4x256xf32>
    %c0_23 = arith.constant 0 : index
    %c0_24 = arith.constant 0 : index
    %38 = vector.load %arg6[%c0_23, %c0_24] : memref<4x1xf32, #tpu.memory_space<vmem>>, vector<4x1xf32>
    %39 = vector.broadcast %38 : vector<4x1xf32> to vector<4x256xf32>
    %40 = arith.addf %37, %39 : vector<4x256xf32>
    %41 = arith.addf %40, %1 : vector<4x256xf32>
    %cst_25 = arith.constant 0.000000e+00 : f32
    %cst_26 = arith.constant 6.000000e+00 : f32
    %42 = vector.broadcast %cst_25 : f32 to vector<4x256xf32>
    %43 = arith.maximumf %42, %41 : vector<4x256xf32>
    %44 = vector.broadcast %cst_26 : f32 to vector<4x256xf32>
    %45 = arith.minimumf %44, %43 : vector<4x256xf32>
    %46 = vector.shape_cast %45 : vector<4x256xf32> to vector<1x4x256xf32>
    %c0_27 = arith.constant 0 : index
    %c0_28 = arith.constant 0 : index
    %c0_29 = arith.constant 0 : index
    %47 = vector.load %arg7[%c0_27, %c0_28, %c0_29] : memref<1x4x256xf32, #tpu.memory_space<vmem>>, vector<1x4x256xf32>
    tpu.vector_store %arg7[%c0_27, %c0_28, %c0_29], %46 {strides = array<i32>} : memref<1x4x256xf32, #tpu.memory_space<vmem>>, vector<1x4x256xf32>,
    return
  }
  func.func @transform_0(%arg0: i32) -> (i32, i32, i32) {
    %c0_i32 = arith.constant 0 : i32
    %c0_i32_0 = arith.constant 0 : i32
    %c0_i32_1 = arith.constant 0 : i32
    return %arg0, %c0_i32, %c0_i32_0 : i32, i32, i32
  }
  func.func @transform_1(%arg0: i32) -> (i32, i32) {
    %c0_i32 = arith.constant 0 : i32
    %c0_i32_0 = arith.constant 0 : i32
    %c0_i32_1 = arith.constant 0 : i32
    return %c0_i32, %c0_i32_0 : i32, i32
  }
  func.func @transform_2(%arg0: i32) -> (i32, i32) {
    %c0_i32 = arith.constant 0 : i32
    %c0_i32_0 = arith.constant 0 : i32
    %c0_i32_1 = arith.constant 0 : i32
    return %c0_i32, %c0_i32_0 : i32, i32
  }
  func.func @transform_3(%arg0: i32) -> (i32, i32) {
    %c0_i32 = arith.constant 0 : i32
    %c0_i32_0 = arith.constant 0 : i32
    %c0_i32_1 = arith.constant 0 : i32
    return %c0_i32, %c0_i32_0 : i32, i32
  }
  func.func @transform_4(%arg0: i32) -> (i32, i32) {
    %c0_i32 = arith.constant 0 : i32
    %c0_i32_0 = arith.constant 0 : i32
    %c0_i32_1 = arith.constant 0 : i32
    return %c0_i32, %c0_i32_0 : i32, i32
  }
  func.func @transform_5(%arg0: i32) -> (i32, i32) {
    %c0_i32 = arith.constant 0 : i32
    %c0_i32_0 = arith.constant 0 : i32
    %c0_i32_1 = arith.constant 0 : i32
    return %c0_i32, %c0_i32_0 : i32, i32
  }
  func.func @transform_6(%arg0: i32) -> (i32, i32, i32) {
    %c0_i32 = arith.constant 0 : i32
    %c0_i32_0 = arith.constant 0 : i32
    %c0_i32_1 = arith.constant 0 : i32
    return %arg0, %c0_i32, %c0_i32_0 : i32, i32, i32
  }
}

</mosaic_0001>

<llo_original>
// kernel: tpu_custom_call.1
$region0: #{tpu_custom_call.1}
  #allocation0 [shape = 'u32[]', space=smem, size = 0x4, offset = 0x4, fixed_abs, tag = 'smem constant byte address 0x4 - core index']
  #allocation1 [shape = 'u32[144,128]{1,0:T(1,128)}', space=vmem, size = 0x12000, scoped, tag = 'internal scratch']
  %s0 = inlined_call_operand.hbm [shape: f32[2,4,256], index: 0, kind: input, shape index: {}]
  %s1 = inlined_call_operand.hbm [shape: f32[36,256], index: 1, kind: input, shape index: {}]
  %s2 = inlined_call_operand.vmem [shape: f32[4,36], index: 2, kind: input, shape index: {}]
  %s3 = inlined_call_operand.vmem [shape: f32[4,1], index: 3, kind: input, shape index: {}]
  %s4 = inlined_call_operand.vmem [shape: f32[4,36], index: 4, kind: input, shape index: {}]
  %s5 = inlined_call_operand.vmem [shape: f32[4,1], index: 5, kind: input, shape index: {}]
  %s6 = inlined_call_operand.hbm [shape: f32[2,4,256], index: 6, kind: output, shape index: {}]
  %s7 = sld [smem:[#allocation0]]
  $region65: #{tpu_custom_call.1} parent=0
    _
  %s9 = ssub.s32 1, %s7
  %s10 = scalar_select 0, %s9, %s7
  $region1: #{tpu_custom_call.1} parent=0
    #allocation2 [shape = 'u8[8192]{0}', space=vmem, size = 0x2000, scoped, tag = 'input window, operand 0']
    #allocation3 [shape = 's32[2]{0}', space=sflag, size = 0x8, scoped, tag = 'scoped memory for tpu_custom_call.1']
    #allocation4 [shape = 's32[2]{0}', space=sflag, size = 0x8, scoped, tag = 'scoped memory for tpu_custom_call.1']
    #allocation5 [shape = 'u8[40960]{0}', space=vmem, size = 0xa000, scoped, tag = 'input window, operand 1, single buffered']
    #allocation6 [shape = 's32[1]{0}', space=sflag, size = 0x4, scoped, tag = 'scoped memory for tpu_custom_call.1']
    #allocation7 [shape = 'u8[8192]{0}', space=vmem, size = 0x2000, scoped, tag = 'output window, operand 0']
    %11 = vsyncpa [#allocation3], 0
    %s12 = scalar_lea.sflag [#allocation3], 1
    %13 = vsyncpa %s12, 0
    %14 = vsyncpa [#allocation6], 0
    %15 = vsyncpa [#allocation4], 0
    %s16 = scalar_lea.sflag [#allocation4], 1
    %17 = vsyncpa %s16, 0
    loop: start=0, step=1, limit=4
    $region2: #{tpu_custom_call.1} parent=1 // loop_pre_header
      _
    $region3: #{tpu_custom_call.1} parent=1 // loop_header
      %s19 = sphi 0, %s23
      %p20 = scmp.ge.s32.totalorder %s19, 4
      %s29 = sphi 0, %s31
      %s32 = sphi 0, %s29
      %s33 = sphi 0, %s32
      %s49 = sphi 0, %s33
      %s53 = sphi 0, %s53
      %s55 = sphi 0, %s53
      %s56 = sphi 0, %s55
      %s70 = sphi 0, %s56
      %s74 = sphi 0, %s74
      %s76 = sphi 0, %s74
      %s77 = sphi 0, %s76
      %s91 = sphi 0, %s77
      %s95 = sphi 0, %s95
      %s97 = sphi 0, %s95
      %s98 = sphi 0, %s97
      %s112 = sphi 0, %s98
      %s116 = sphi 0, %s116
      %s118 = sphi 0, %s116
      %s119 = sphi 0, %s118
      %s133 = sphi 0, %s119
      %s137 = sphi 0, %s137
      %s139 = sphi 0, %s137
      %s140 = sphi 0, %s139
      %s154 = sphi 0, %s140
      %s160 = sphi 0, %s162
      %s163 = sphi 0, %s160
      %s164 = sphi 0, %s163
      %s180 = sphi 0, %s164
    $region4: #{tpu_custom_call.1} parent=1 // loop_header_branch
      %22 = sbr.rel (%p20) target = $region8
    $region5: #{tpu_custom_call.1} parent=1 // loop_body
      %s24 = ssub.s32 %s19, 1
      %s25 = ssub.s32 %s19, 2
      %s26 = sadd.s32 %s19, 1
      %s27 = ssub.s32 %s19, %s26
      %p28 = scmp.eq.s32.totalorder %s27, 0
      %s30 = sadd.s32 %s29, 1
      %s31 = scalar_select %p28, %s29, %s30
      %p34 = pneg %p28
      %p35 = scmp.eq.s32.totalorder %s19, 1
      %p36 = por %p34, %p35
      %p37 = scmp.ne.s32.totalorder %s29, %s32
      %p38 = scmp.eq.s32.totalorder %s19, 0
      %p39 = por %p37, %p38
      %p40 = scmp.ne.s32.totalorder %s29, %s32
      %p41 = scmp.eq.s32.totalorder %s24, 1
      %p42 = por %p40, %p41
      %p43 = scmp.ne.s32.totalorder %s32, %s33
      %p44 = scmp.eq.s32.totalorder %s24, 0
      %p45 = por %p43, %p44
      %p46 = scmp.ne.s32.totalorder %s32, %s33
      %p47 = scmp.eq.s32.totalorder %s25, 1
      %p48 = por %p46, %p47
      %p50 = scmp.ne.s32.totalorder %s33, %s49
      %p51 = scmp.eq.s32.totalorder %s25, 0
      %p52 = por %p50, %p51
      %s54 = sadd.s32 %s53, 1
      %p57 = scmp.eq.s32.totalorder %s19, 1
      %p58 = scmp.ne.s32.totalorder %s53, %s55
      %p59 = scmp.eq.s32.totalorder %s19, 0
      %p60 = por %p58, %p59
      %p61 = scmp.ne.s32.totalorder %s53, %s55
      %p62 = scmp.eq.s32.totalorder %s24, 1
      %p63 = por %p61, %p62
      %p64 = scmp.ne.s32.totalorder %s55, %s56
      %p65 = scmp.eq.s32.totalorder %s24, 0
      %p66 = por %p64, %p65
      %p67 = scmp.ne.s32.totalorder %s55, %s56
      %p68 = scmp.eq.s32.totalorder %s25, 1
      %p69 = por %p67, %p68
      %p71 = scmp.ne.s32.totalorder %s56, %s70
      %p72 = scmp.eq.s32.totalorder %s25, 0
      %p73 = por %p71, %p72
      %s75 = sadd.s32 %s74, 1
      %p78 = scmp.eq.s32.totalorder %s19, 1
      %p79 = scmp.ne.s32.totalorder %s74, %s76
      %p80 = scmp.eq.s32.totalorder %s19, 0
      %p81 = por %p79, %p80
      %p82 = scmp.ne.s32.totalorder %s74, %s76
      %p83 = scmp.eq.s32.totalorder %s24, 1
      %p84 = por %p82, %p83
      %p85 = scmp.ne.s32.totalorder %s76, %s77
      %p86 = scmp.eq.s32.totalorder %s24, 0
      %p87 = por %p85, %p86
      %p88 = scmp.ne.s32.totalorder %s76, %s77
      %p89 = scmp.eq.s32.totalorder %s25, 1
      %p90 = por %p88, %p89
      %p92 = scmp.ne.s32.totalorder %s77, %s91
      %p93 = scmp.eq.s32.totalorder %s25, 0
      %p94 = por %p92, %p93
      %s96 = sadd.s32 %s95, 1
      %p99 = scmp.eq.s32.totalorder %s19, 1
      %p100 = scmp.ne.s32.totalorder %s95, %s97
      %p101 = scmp.eq.s32.totalorder %s19, 0
      %p102 = por %p100, %p101
      %p103 = scmp.ne.s32.totalorder %s95, %s97
      %p104 = scmp.eq.s32.totalorder %s24, 1
      %p105 = por %p103, %p104
      %p106 = scmp.ne.s32.totalorder %s97, %s98
      %p107 = scmp.eq.s32.totalorder %s24, 0
      %p108 = por %p106, %p107
      %p109 = scmp.ne.s32.totalorder %s97, %s98
      %p110 = scmp.eq.s32.totalorder %s25, 1
      %p111 = por %p109, %p110
      %p113 = scmp.ne.s32.totalorder %s98, %s112
      %p114 = scmp.eq.s32.totalorder %s25, 0
      %p115 = por %p113, %p114
      %s117 = sadd.s32 %s116, 1
      %p120 = scmp.eq.s32.totalorder %s19, 1
      %p121 = scmp.ne.s32.totalorder %s116, %s118
      %p122 = scmp.eq.s32.totalorder %s19, 0
      %p123 = por %p121, %p122
      %p124 = scmp.ne.s32.totalorder %s116, %s118
      %p125 = scmp.eq.s32.totalorder %s24, 1
      %p126 = por %p124, %p125
      %p127 = scmp.ne.s32.totalorder %s118, %s119
      %p128 = scmp.eq.s32.totalorder %s24, 0
      %p129 = por %p127, %p128
      %p130 = scmp.ne.s32.totalorder %s118, %s119
      %p131 = scmp.eq.s32.totalorder %s25, 1
      %p132 = por %p130, %p131
      %p134 = scmp.ne.s32.totalorder %s119, %s133
      %p135 = scmp.eq.s32.totalorder %s25, 0
      %p136 = por %p134, %p135
      %s138 = sadd.s32 %s137, 1
      %p141 = scmp.eq.s32.totalorder %s19, 1
      %p142 = scmp.ne.s32.totalorder %s137, %s139
      %p143 = scmp.eq.s32.totalorder %s19, 0
      %p144 = por %p142, %p143
      %p145 = scmp.ne.s32.totalorder %s137, %s139
      %p146 = scmp.eq.s32.totalorder %s24, 1
      %p147 = por %p145, %p146
      %p148 = scmp.ne.s32.totalorder %s139, %s140
      %p149 = scmp.eq.s32.totalorder %s24, 0
      %p150 = por %p148, %p149
      %p151 = scmp.ne.s32.totalorder %s139, %s140
      %p152 = scmp.eq.s32.totalorder %s25, 1
      %p153 = por %p151, %p152
      %p155 = scmp.ne.s32.totalorder %s140, %s154
      %p156 = scmp.eq.s32.totalorder %s25, 0
      %p157 = por %p155, %p156
      %s158 = ssub.s32 %s19, %s26
      %p159 = scmp.eq.s32.totalorder %s158, 0
      %s161 = sadd.s32 %s160, 1
      %s162 = scalar_select %p159, %s160, %s161
      %p165 = pneg %p159
      %p166 = scmp.eq.s32.totalorder %s19, 1
      %p167 = por %p165, %p166
      %p168 = scmp.ne.s32.totalorder %s160, %s163
      %p169 = scmp.eq.s32.totalorder %s19, 0
      %p170 = por %p168, %p169
      %p171 = scmp.ne.s32.totalorder %s160, %s163
      %p172 = scmp.eq.s32.totalorder %s24, 1
      %p173 = por %p171, %p172
      %p174 = scmp.ne.s32.totalorder %s163, %s164
      %p175 = scmp.eq.s32.totalorder %s24, 0
      %p176 = por %p174, %p175
      %p177 = scmp.ne.s32.totalorder %s163, %s164
      %p178 = scmp.eq.s32.totalorder %s25, 1
      %p179 = por %p177, %p178
      %p181 = scmp.ne.s32.totalorder %s164, %s180
      %p182 = scmp.eq.s32.totalorder %s25, 0
      %p183 = por %p181, %p182
      %p184 = scmp.le.s32.totalorder 1, %s19
      %p185 = scmp.lt.s32.totalorder %s19, 3
      %p186 = pnand %p184, %p185
      %p187 = pneg %p186
      // Predicated region
      $region9: #{tpu_custom_call.1} parent=5 // pred_check
        _
      $region10: #{tpu_custom_call.1} parent=5 // pred_check_branch
        %189 = sbr.rel (%p186) target = $region12
      $region11: #{tpu_custom_call.1} parent=5 // pred_region
        %s190 = ssub.s32 %s19, 1
        // Predicated region
        $region13: #{tpu_custom_call.1} parent=11 // pred_check
          %p191 = pneg %p66
        $region14: #{tpu_custom_call.1} parent=11 // pred_check_branch
          %193 = sbr.rel (%p191) target = $region16
        $region15: #{tpu_custom_call.1} parent=11 // pred_region
          %s195 = ssub.s32 1280, 1280
          %196 = vsyncadd [#allocation6], %s195
          %s197 = sshll.u32 [#allocation5], 4
          %s198 = int_to_ptr.vmem [resolvable:$true] %s197
          %203 = dma.hbm_to_vmem [thread:$0]  %s1, 1280, %s198, [#allocation6], 256, 256, 16
        $region16: #{tpu_custom_call.1} parent=11 // pred_fallthru
          _
        // Predicated region
        $region17: #{tpu_custom_call.1} parent=11 // pred_check
          %p204 = pneg %p87
        $region18: #{tpu_custom_call.1} parent=11 // pred_check_branch
          %206 = sbr.rel (%p204) target = $region20
        $region19: #{tpu_custom_call.1} parent=11 // pred_region
          _
        $region20: #{tpu_custom_call.1} parent=11 // pred_fallthru
          _
        // Predicated region
        $region21: #{tpu_custom_call.1} parent=11 // pred_check
          %p207 = pneg %p108
        $region22: #{tpu_custom_call.1} parent=11 // pred_check_branch
          %209 = sbr.rel (%p207) target = $region24
        $region23: #{tpu_custom_call.1} parent=11 // pred_region
          _
        $region24: #{tpu_custom_call.1} parent=11 // pred_fallthru
          _
        // Predicated region
        $region25: #{tpu_custom_call.1} parent=11 // pred_check
          %p210 = pneg %p129
        $region26: #{tpu_custom_call.1} parent=11 // pred_check_branch
          %212 = sbr.rel (%p210) target = $region28
        $region27: #{tpu_custom_call.1} parent=11 // pred_region
          _
        $region28: #{tpu_custom_call.1} parent=11 // pred_fallthru
          _
        // Predicated region
        $region29: #{tpu_custom_call.1} parent=11 // pred_check
          %p213 = pneg %p150
        $region30: #{tpu_custom_call.1} parent=11 // pred_check_branch
          %215 = sbr.rel (%p213) target = $region32
        $region31: #{tpu_custom_call.1} parent=11 // pred_region
          _
        $region32: #{tpu_custom_call.1} parent=11 // pred_fallthru
          _
      $region12: #{tpu_custom_call.1} parent=5 // pred_fallthru
        _
      %p216 = scmp.lt.s32.totalorder %s19, 2
      // Predicated region
      $region33: #{tpu_custom_call.1} parent=5 // pred_check
        %p217 = pneg %p216
      $region34: #{tpu_custom_call.1} parent=5 // pred_check_branch
        %219 = sbr.rel (%p217) target = $region36
      $region35: #{tpu_custom_call.1} parent=5 // pred_region
        // Predicated region
        $region37: #{tpu_custom_call.1} parent=35 // pred_check
          %p220 = pneg %p39
        $region38: #{tpu_custom_call.1} parent=35 // pred_check_branch
          %222 = sbr.rel (%p220) target = $region40
        $region39: #{tpu_custom_call.1} parent=35 // pred_region
          %s223 = sand.u32 %s29, 1
          %s224 = scalar_lea.sflag [#allocation3], %s223
          %s225 = sand.u32 %s29, 1
          %s226 = smul.addr %s225, 8
          %s227 = scalar_lea.vmem [#allocation2], %s226
          %s229 = ssub.s32 128, 128
          %230 = vsyncadd %s224, %s229
          %s231 = smul.addr %s19, 2
          %s232 = smul.addr %s231, 64
          %s233 = scalar_lea.hbm %s0, %s232
          %s235 = sshll.u32 %s227, 4
          %s236 = int_to_ptr.vmem [resolvable:$true] %s235
          %238 = dma.hbm_to_vmem [thread:$0]  %s233, 128, %s236, %s224
        $region40: #{tpu_custom_call.1} parent=35 // pred_fallthru
          _
      $region36: #{tpu_custom_call.1} parent=5 // pred_fallthru
        _
      %p239 = scmp.le.s32.totalorder 1, %s19
      %p240 = scmp.lt.s32.totalorder %s19, 3
      %p241 = pnand %p239, %p240
      %p242 = pneg %p241
      // Predicated region
      $region41: #{tpu_custom_call.1} parent=5 // pred_check
        _
      $region42: #{tpu_custom_call.1} parent=5 // pred_check_branch
        %244 = sbr.rel (%p241) target = $region44
      $region43: #{tpu_custom_call.1} parent=5 // pred_region
        %s245 = ssub.s32 %s19, 1
        %s246 = sand.u32 %s32, 1
        %s247 = scalar_lea.sflag [#allocation3], %s246
        %s248 = sand.u32 %s32, 1
        %s249 = smul.addr %s248, 8
        %s250 = scalar_lea.vmem [#allocation2], %s249
        // Predicated region
        $region45: #{tpu_custom_call.1} parent=43 // pred_check
          %p251 = pneg %p45
        $region46: #{tpu_custom_call.1} parent=43 // pred_check_branch
          %253 = sbr.rel (%p251) target = $region48
        $region47: #{tpu_custom_call.1} parent=43 // pred_region
          %254 = dma.done %s247, 128
        $region48: #{tpu_custom_call.1} parent=43 // pred_fallthru
          _
        // Predicated region
        $region49: #{tpu_custom_call.1} parent=43 // pred_check
          %p255 = pneg %p66
        $region50: #{tpu_custom_call.1} parent=43 // pred_check_branch
          %257 = sbr.rel (%p255) target = $region52
        $region51: #{tpu_custom_call.1} parent=43 // pred_region
          %258 = dma.done [#allocation6], 1280
        $region52: #{tpu_custom_call.1} parent=43 // pred_fallthru
          _
        %s259 = sand.u32 %s32, 1
        %s260 = scalar_lea.sflag [#allocation3], %s259
        %s261 = sand.u32 %s32, 1
        %s262 = smul.addr %s261, 8
        %s263 = scalar_lea.vmem [#allocation2], %s262
        %p264 = pneg %p45
        %p265 = pneg %p42
        %p266 = pneg %p66
        %p267 = pneg %p63
        %p268 = pneg %p87
        %p269 = pneg %p84
        %p270 = pneg %p108
        %p271 = pneg %p105
        %p272 = pneg %p129
        %p273 = pneg %p126
        %p274 = pneg %p150
        %p275 = pneg %p147
        %p276 = pneg %p176
        %p277 = pneg %p173
        %s278 = sand.u32 %s163, 1
        %s279 = scalar_lea.sflag [#allocation4], %s278
        %s280 = sand.u32 %s163, 1
        %s281 = smul.addr %s280, 8
        %s282 = scalar_lea.vmem [#allocation7], %s281
        %v283 = vld [vmem:[%s250] sm:$0xff]
        %v284 = vld [vmem:[#allocation5] sm:$0xff]
        %v285 = vld [vmem:[#allocation5 + $0x8] sm:$0xff]
        %v286 = vld [vmem:[#allocation5 + $0x10] sm:$0xff]
        %v287 = vld [vmem:[#allocation5 + $0x18] sm:$0xff]
        %v288 = vld [vmem:[#allocation5 + $0x20] sm:$0xff]
        %v289 = vld [vmem:[#allocation5 + $0x28] sm:$0xff]
        %v290 = vld [vmem:[#allocation5 + $0x30] sm:$0xff]
        %v291 = vld [vmem:[#allocation5 + $0x38] sm:$0xff]
        %v292 = vld [vmem:[#allocation5 + $0x40] sm:$0xf]
        %v293 = vld [vmem:[#allocation5 + $0x48] sm:$0xf]
        %v294 = vmax.f32 %v283, 0.0
        %v295 = vmin.f32 %v294, 6.0
        %v297 = vcombine.high %v295, %v295
        %299 = vrot.lane.b32.xlu0 %v295, 17
        %v300 = vpop.permute.xlu0 %299
        %301 = vrot.lane.b32.xlu0 %v297, 17
        %v302 = vpop.permute.xlu0 %301
        %v303 = vlaneseq
        %v304 = vand.u32 %v303, 127
        %vm305 = vcmp.lt.s32.totalorder %v304, 17
        %v306 = vsel %vm305, %v300, %v302
        %v307 = vsel %vm305, %v302, %v300
        %308 = vrot.lane.b32.xlu0 %v295, 16
        %v309 = vpop.permute.xlu0 %308
        %310 = vrot.lane.b32.xlu0 %v297, 16
        %v311 = vpop.permute.xlu0 %310
        %vm312 = vcmp.lt.s32.totalorder %v304, 16
        %v313 = vsel %vm312, %v309, %v311
        %v314 = vsel %vm312, %v311, %v309
        %315 = vrot.lane.b32.xlu0 %v295, 15
        %v316 = vpop.permute.xlu0 %315
        %317 = vrot.lane.b32.xlu0 %v297, 15
        %v318 = vpop.permute.xlu0 %317
        %vm319 = vcmp.lt.s32.totalorder %v304, 15
        %v320 = vsel %vm319, %v316, %v318
        %v321 = vsel %vm319, %v318, %v316
        %322 = vrot.lane.b32.xlu0 %v295, 1
        %v323 = vpop.permute.xlu0 %322
        %324 = vrot.lane.b32.xlu0 %v297, 1
        %v325 = vpop.permute.xlu0 %324
        %vm326 = vcmp.lt.s32.totalorder %v304, 1
        %v327 = vsel %vm326, %v323, %v325
        %v328 = vsel %vm326, %v325, %v323
        %329 = vrot.lane.b32.xlu0 %v295, 127
        %v330 = vpop.permute.xlu0 %329
        %331 = vrot.lane.b32.xlu0 %v297, 127
        %v332 = vpop.permute.xlu0 %331
        %vm333 = vcmp.lt.s32.totalorder %v304, 127
        %v334 = vsel %vm333, %v330, %v332
        %v335 = vsel %vm333, %v332, %v330
        %336 = vrot.lane.b32.xlu0 %v295, 113
        %v337 = vpop.permute.xlu0 %336
        %338 = vrot.lane.b32.xlu0 %v297, 113
        %v339 = vpop.permute.xlu0 %338
        %vm340 = vcmp.lt.s32.totalorder %v304, 113
        %v341 = vsel %vm340, %v337, %v339
        %v342 = vsel %vm340, %v339, %v337
        %343 = vrot.lane.b32.xlu0 %v295, 112
        %v344 = vpop.permute.xlu0 %343
        %345 = vrot.lane.b32.xlu0 %v297, 112
        %v346 = vpop.permute.xlu0 %345
        %vm347 = vcmp.lt.s32.totalorder %v304, 112
        %v348 = vsel %vm347, %v344, %v346
        %v349 = vsel %vm347, %v346, %v344
        %350 = vrot.lane.b32.xlu0 %v295, 111
        %v351 = vpop.permute.xlu0 %350
        %352 = vrot.lane.b32.xlu0 %v297, 111
        %v353 = vpop.permute.xlu0 %352
        %vm354 = vcmp.lt.s32.totalorder %v304, 111
        %v355 = vsel %vm354, %v351, %v353
        %v356 = vsel %vm354, %v353, %v351
        %v359 = vrot.slane %v314, 4
        %v360 = vrot.slane %v313, 4
        %v365 = vrot.slane %v328, 4
        %v366 = vrot.slane %v327, 4
        %v371 = vrot.slane %v334, 4
        %v372 = vrot.slane %v335, 4
        %v377 = vrot.slane %v348, 4
        %v378 = vrot.slane %v349, 4
        %vm381 = vcmask 1043456
        %v382 = vsel %vm381, %v307, %v359
        %v383 = vsel %vm381, %v306, %v360
        %v384 = vsel %vm381, %v321, %v365
        %v385 = vsel %vm381, %v320, %v366
        %v386 = vsel %vm381, %v295, %v371
        %v387 = vsel %vm381, %v297, %v372
        %v388 = vsel %vm381, %v341, %v377
        %v389 = vsel %vm381, %v342, %v378
        %v390 = vmul.f32 %v382, %v284
        %v391 = vmul.f32 %v383, %v285
        %v392 = vmul.f32 %v384, %v286
        %v393 = vmul.f32 %v385, %v287
        %v394 = vmul.f32 %v386, %v288
        %v395 = vmul.f32 %v387, %v289
        %v396 = vmul.f32 %v388, %v290
        %v397 = vmul.f32 %v389, %v291
        %v398 = vmul.f32 %v355, %v292
        %v399 = vmul.f32 %v356, %v293
        %v400 = vld [vmem:[%s2] sm:$0xf]
        %v401 = vld [vmem:[%s3] sm:$0xf]
        %403 = vset.pattern.permute.xlu0 0
        %404 = vperm.xlu0 %403, %v401
        %v405 = vpop.permute.xlu0 %404
        %vm407 = vcmask 293888
        %v409 = vsel %vm407, %v400, 0
        %v412 = vsel %vm381, %v398, 0
        %v415 = vsel %vm381, %v399, 0
        %417 = vmatprep.subr.mxu0 %v391
        %418 = vmatpush1.msra.mxu0 %v390
        %419 = vmatprep.subr.mxu0 %v393
        %420 = vmatpush1.msra.mxu0 %v392
        %421 = vmatprep.subr.mxu0 %v395
        %422 = vmatpush1.msra.mxu0 %v394
        %423 = vmatprep.subr.mxu0 %v397
        %424 = vmatpush1.msra.mxu0 %v396
        %425 = vmatprep.subr.mxu0 %v415
        %426 = vmatpush1.msra.mxu0 %v412
        %427 = vmatprep.subr.mxu0 0.0
        %428 = vmatpush1.msra.mxu0 0.0
        %429 = vmatprep.subr.mxu0 0.0
        %430 = vmatpush1.msra.mxu0 0.0
        %431 = vmatprep.subr.mxu0 0.0
        %432 = vmatpush1.msra.mxu0 0.0
        %433 = vmatprep.subr.mxu0 0.0
        %434 = vmatpush1.msra.mxu0 0.0
        %435 = vmatprep.subr.mxu0 0.0
        %436 = vmatpush1.msra.mxu0 0.0
        %437 = vmatprep.subr.mxu0 0.0
        %438 = vmatpush1.msra.mxu0 0.0
        %439 = vmatprep.subr.mxu0 0.0
        %440 = vmatpush1.msra.mxu0 0.0
        %441 = vmatprep.subr.mxu0 0.0
        %442 = vmatpush1.msra.mxu0 0.0
        %443 = vmatprep.subr.mxu0 0.0
        %444 = vmatpush1.msra.mxu0 0.0
        %445 = vmatprep.subr.mxu0 0.0
        %446 = vmatpush1.msra.mxu0 0.0
        %447 = vmatprep.subr.mxu0 0.0
        %448 = vmatpush1.msra.mxu0 0.0
        %449 = vmatprep.subr.mxu0 0.0
        %450 = vmatpush1.msra.mxu0 0.0
        %451 = vmatprep.subr.mxu0 0.0
        %452 = vmatpush1.msra.mxu0 0.0
        %453 = vmatprep.subr.mxu0 0.0
        %454 = vmatpush1.msra.mxu0 0.0
        %455 = vmatprep.subr.mxu0 0.0
        %456 = vmatpush1.msra.mxu0 0.0
        %457 = vmatprep.subr.mxu0 0.0
        %458 = vmatpush1.msra.mxu0 0.0
        %459 = vmatprep.subr.mxu0 0.0
        %460 = vmatpush1.msra.mxu0 0.0
        %461 = vmatprep.subr.mxu0 0.0
        %462 = vmatpush1.msra.mxu0 0.0
        %463 = vmatprep.subr.mxu0 0.0
        %464 = vmatpush1.msra.mxu0 0.0
        %465 = vmatprep.subr.mxu0 0.0
        %466 = vmatpush1.msra.mxu0 0.0
        %467 = vmatprep.subr.mxu0 0.0
        %468 = vmatpush1.msra.mxu0 0.0
        %469 = vmatprep.subr.mxu0 0.0
        %470 = vmatpush1.msra.mxu0 0.0
        %471 = vmatprep.subr.mxu0 0.0
        %472 = vmatpush1.msra.mxu0 0.0
        %473 = vmatprep.subr.mxu0 0.0
        %474 = vmatpush1.msra.mxu0 0.0
        %475 = vmatprep.subr.mxu0 0.0
        %476 = vmatpush1.msra.mxu0 0.0
        %477 = vmatprep.subr.mxu0 0.0
        %478 = vmatpush1.msra.mxu0 0.0
        %479 = vmatprep.subr.mxu0 0.0
        %480 = vmatpush1.msra.mxu0 0.0
        %481 = vmatprep.mubr.f32.mxu0 0.0
        %482 = vmatmul.mubr.f32.gmra.mrb[0].mxu0 %v409
        %v483 = vpop.f32.mrb[0].mxu0
        %v484 = vadd.f32 %v405, %v483
        %v485 = vpop.f32.mrb[0].mxu0
        %v486 = vadd.f32 %v405, %v485
        %487 = vdwg.mxu0
        %v488 = vmax.f32 %v484, 0.0
        %v489 = vmax.f32 %v486, 0.0
        %v490 = vmin.f32 %v488, 6.0
        %v491 = vmin.f32 %v489, 6.0
        %492 = vrot.lane.b32.xlu0 %v490, 17
        %v493 = vpop.permute.xlu0 %492
        %494 = vrot.lane.b32.xlu0 %v491, 17
        %v495 = vpop.permute.xlu0 %494
        %v496 = vsel %vm305, %v493, %v495
        %v497 = vsel %vm305, %v495, %v493
        %498 = vrot.lane.b32.xlu0 %v490, 16
        %v499 = vpop.permute.xlu0 %498
        %500 = vrot.lane.b32.xlu0 %v491, 16
        %v501 = vpop.permute.xlu0 %500
        %v502 = vsel %vm312, %v499, %v501
        %v503 = vsel %vm312, %v501, %v499
        %504 = vrot.lane.b32.xlu0 %v490, 15
        %v505 = vpop.permute.xlu0 %504
        %506 = vrot.lane.b32.xlu0 %v491, 15
        %v507 = vpop.permute.xlu0 %506
        %v508 = vsel %vm319, %v505, %v507
        %v509 = vsel %vm319, %v507, %v505
        %510 = vrot.lane.b32.xlu0 %v490, 1
        %v511 = vpop.permute.xlu0 %510
        %512 = vrot.lane.b32.xlu0 %v491, 1
        %v513 = vpop.permute.xlu0 %512
        %v514 = vsel %vm326, %v511, %v513
        %v515 = vsel %vm326, %v513, %v511
        %516 = vrot.lane.b32.xlu0 %v490, 127
        %v517 = vpop.permute.xlu0 %516
        %518 = vrot.lane.b32.xlu0 %v491, 127
        %v519 = vpop.permute.xlu0 %518
        %v520 = vsel %vm333, %v517, %v519
        %v521 = vsel %vm333, %v519, %v517
        %522 = vrot.lane.b32.xlu0 %v490, 113
        %v523 = vpop.permute.xlu0 %522
        %524 = vrot.lane.b32.xlu0 %v491, 113
        %v525 = vpop.permute.xlu0 %524
        %v526 = vsel %vm340, %v523, %v525
        %v527 = vsel %vm340, %v525, %v523
        %528 = vrot.lane.b32.xlu0 %v490, 112
        %v529 = vpop.permute.xlu0 %528
        %530 = vrot.lane.b32.xlu0 %v491, 112
        %v531 = vpop.permute.xlu0 %530
        %v532 = vsel %vm347, %v529, %v531
        %v533 = vsel %vm347, %v531, %v529
        %534 = vrot.lane.b32.xlu0 %v490, 111
        %v535 = vpop.permute.xlu0 %534
        %536 = vrot.lane.b32.xlu0 %v491, 111
        %v537 = vpop.permute.xlu0 %536
        %v538 = vsel %vm354, %v535, %v537
        %v539 = vsel %vm354, %v537, %v535
        %v542 = vrot.slane %v503, 4
        %v543 = vrot.slane %v502, 4
        %v548 = vrot.slane %v515, 4
        %v549 = vrot.slane %v514, 4
        %v554 = vrot.slane %v520, 4
        %v555 = vrot.slane %v521, 4
        %v560 = vrot.slane %v532, 4
        %v561 = vrot.slane %v533, 4
        %v564 = vsel %vm381, %v497, %v542
        %v565 = vsel %vm381, %v496, %v543
        %v566 = vsel %vm381, %v509, %v548
        %v567 = vsel %vm381, %v508, %v549
        %v568 = vsel %vm381, %v490, %v554
        %v569 = vsel %vm381, %v491, %v555
        %v570 = vsel %vm381, %v526, %v560
        %v571 = vsel %vm381, %v527, %v561
        %v572 = vmul.f32 %v564, %v284
        %v573 = vmul.f32 %v565, %v285
        %v574 = vmul.f32 %v566, %v286
        %v575 = vmul.f32 %v567, %v287
        %v576 = vmul.f32 %v568, %v288
        %v577 = vmul.f32 %v569, %v289
        %v578 = vmul.f32 %v570, %v290
        %v579 = vmul.f32 %v571, %v291
        %v580 = vmul.f32 %v538, %v292
        %v581 = vmul.f32 %v539, %v293
        %v582 = vld [vmem:[%s4] sm:$0xf]
        %v583 = vld [vmem:[%s5] sm:$0xf]
        %585 = vset.pattern.permute.xlu0 0
        %586 = vperm.xlu0 %585, %v583
        %v587 = vpop.permute.xlu0 %586
        %v590 = vsel %vm407, %v582, 0
        %v593 = vsel %vm381, %v580, 0
        %v596 = vsel %vm381, %v581, 0
        %598 = vmatprep.subr.mxu0 %v573
        %599 = vmatpush1.msra.mxu0 %v572
        %600 = vmatprep.subr.mxu0 %v575
        %601 = vmatpush1.msra.mxu0 %v574
        %602 = vmatprep.subr.mxu0 %v577
        %603 = vmatpush1.msra.mxu0 %v576
        %604 = vmatprep.subr.mxu0 %v579
        %605 = vmatpush1.msra.mxu0 %v578
        %606 = vmatprep.subr.mxu0 %v596
        %607 = vmatpush1.msra.mxu0 %v593
        %608 = vmatprep.subr.mxu0 0.0
        %609 = vmatpush1.msra.mxu0 0.0
        %610 = vmatprep.subr.mxu0 0.0
        %611 = vmatpush1.msra.mxu0 0.0
        %612 = vmatprep.subr.mxu0 0.0
        %613 = vmatpush1.msra.mxu0 0.0
        %614 = vmatprep.subr.mxu0 0.0
        %615 = vmatpush1.msra.mxu0 0.0
        %616 = vmatprep.subr.mxu0 0.0
        %617 = vmatpush1.msra.mxu0 0.0
        %618 = vmatprep.subr.mxu0 0.0
        %619 = vmatpush1.msra.mxu0 0.0
        %620 = vmatprep.subr.mxu0 0.0
        %621 = vmatpush1.msra.mxu0 0.0
        %622 = vmatprep.subr.mxu0 0.0
        %623 = vmatpush1.msra.mxu0 0.0
        %624 = vmatprep.subr.mxu0 0.0
        %625 = vmatpush1.msra.mxu0 0.0
        %626 = vmatprep.subr.mxu0 0.0
        %627 = vmatpush1.msra.mxu0 0.0
        %628 = vmatprep.subr.mxu0 0.0
        %629 = vmatpush1.msra.mxu0 0.0
        %630 = vmatprep.subr.mxu0 0.0
        %631 = vmatpush1.msra.mxu0 0.0
        %632 = vmatprep.subr.mxu0 0.0
        %633 = vmatpush1.msra.mxu0 0.0
        %634 = vmatprep.subr.mxu0 0.0
        %635 = vmatpush1.msra.mxu0 0.0
        %636 = vmatprep.subr.mxu0 0.0
        %637 = vmatpush1.msra.mxu0 0.0
        %638 = vmatprep.subr.mxu0 0.0
        %639 = vmatpush1.msra.mxu0 0.0
        %640 = vmatprep.subr.mxu0 0.0
        %641 = vmatpush1.msra.mxu0 0.0
        %642 = vmatprep.subr.mxu0 0.0
        %643 = vmatpush1.msra.mxu0 0.0
        %644 = vmatprep.subr.mxu0 0.0
        %645 = vmatpush1.msra.mxu0 0.0
        %646 = vmatprep.subr.mxu0 0.0
        %647 = vmatpush1.msra.mxu0 0.0
        %648 = vmatprep.subr.mxu0 0.0
        %649 = vmatpush1.msra.mxu0 0.0
        %650 = vmatprep.subr.mxu0 0.0
        %651 = vmatpush1.msra.mxu0 0.0
        %652 = vmatprep.subr.mxu0 0.0
        %653 = vmatpush1.msra.mxu0 0.0
        %654 = vmatprep.subr.mxu0 0.0
        %655 = vmatpush1.msra.mxu0 0.0
        %656 = vmatprep.subr.mxu0 0.0
        %657 = vmatpush1.msra.mxu0 0.0
        %658 = vmatprep.subr.mxu0 0.0
        %659 = vmatpush1.msra.mxu0 0.0
        %660 = vmatprep.subr.mxu0 0.0
        %661 = vmatpush1.msra.mxu0 0.0
        %662 = vmatprep.mubr.f32.mxu0 0.0
        %663 = vmatmul.mubr.f32.gmra.mrb[0].mxu0 %v590
        %v664 = vpop.f32.mrb[0].mxu0
        %v665 = vadd.f32 %v587, %v664
        %v666 = vpop.f32.mrb[0].mxu0
        %v667 = vadd.f32 %v587, %v666
        %668 = vdwg.mxu0
        %v670 = vcombine.high %v283, %v283
        %v672 = vadd.f32 %v665, %v283
        %v673 = vadd.f32 %v667, %v670
        %v674 = vmax.f32 %v672, 0.0
        %v675 = vmax.f32 %v673, 0.0
        %v676 = vmin.f32 %v674, 6.0
        %v677 = vmin.f32 %v675, 6.0
        %v680 = vcombine.low %v676, %v677
        %682 = vst [vmem:[%s282] sm:$0xff] %v680
        %s683 = sand.u32 %s163, 1
        %s684 = scalar_lea.sflag [#allocation4], %s683
        %s685 = sand.u32 %s163, 1
        %s686 = smul.addr %s685, 8
        %s687 = scalar_lea.vmem [#allocation7], %s686
        // Predicated region
        $region53: #{tpu_custom_call.1} parent=43 // pred_check
          %p688 = pneg %p173
        $region54: #{tpu_custom_call.1} parent=43 // pred_check_branch
          %690 = sbr.rel (%p688) target = $region56
        $region55: #{tpu_custom_call.1} parent=43 // pred_region
          %s692 = ssub.s32 128, 128
          %693 = vsyncadd %s684, %s692
          %s694 = smul.addr %s24, 2
          %s695 = smul.addr %s694, 64
          %s696 = scalar_lea.hbm %s6, %s695
          %s698 = sshll.u32 %s687, 4
          %s699 = int_to_ptr.vmem [resolvable:$true] %s698
          %701 = dma.vmem_to_hbm [thread:$0]  %s699, 128, %s696, %s684
        $region56: #{tpu_custom_call.1} parent=43 // pred_fallthru
          _
      $region44: #{tpu_custom_call.1} parent=5 // pred_fallthru
        _
      %p702 = scmp.le.s32.totalorder 2, %s19
      // Predicated region
      $region57: #{tpu_custom_call.1} parent=5 // pred_check
        %p703 = pneg %p702
      $region58: #{tpu_custom_call.1} parent=5 // pred_check_branch
        %705 = sbr.rel (%p703) target = $region60
      $region59: #{tpu_custom_call.1} parent=5 // pred_region
        %s706 = ssub.s32 %s19, 2
        // Predicated region
        $region61: #{tpu_custom_call.1} parent=59 // pred_check
          %p707 = pneg %p179
        $region62: #{tpu_custom_call.1} parent=59 // pred_check_branch
          %709 = sbr.rel (%p707) target = $region64
        $region63: #{tpu_custom_call.1} parent=59 // pred_region
          %s710 = sand.u32 %s164, 1
          %s711 = scalar_lea.sflag [#allocation4], %s710
          %s712 = sand.u32 %s164, 1
          %s713 = smul.addr %s712, 8
          %s714 = scalar_lea.vmem [#allocation7], %s713
          %715 = dma.done %s711, 128
        $region64: #{tpu_custom_call.1} parent=59 // pred_fallthru
          _
      $region60: #{tpu_custom_call.1} parent=5 // pred_fallthru
        _
    $region6: #{tpu_custom_call.1} parent=1 // loop_footer
      %s23 = sadd.s32 1, %s19
    $region7: #{tpu_custom_call.1} parent=1 // loop_footer_branch
      %18 = sbr.rel target = $region3
    $region8: #{tpu_custom_call.1} parent=1 // loop_exit
      _
    %716 = vsyncpa [#allocation3], 1
    %s717 = scalar_lea.sflag [#allocation3], 1
    %718 = vsyncpa %s717, 1
    %719 = vsyncpa [#allocation6], 1
    %720 = vsyncpa [#allocation4], 1
    %s721 = scalar_lea.sflag [#allocation4], 1
    %722 = vsyncpa %s721, 1

</llo_original>
